<compile_context>
chip_gen: v7x
topology: tpu7x:2x2x1
jax: 0.10.0
libtpu: 0.0.40
codegen_flags: <defaults>
</compile_context>

<pallas_src>
import jax
import jax.numpy as jnp
from jax import lax
from jax.experimental import pallas as pl
from jax.experimental.pallas import tpu as pltpu


HIDDEN_FC = 128      # width of the module's internal Linear layer (fixed by spec)
NUM_CLASSES = 3      # (negative, zero, positive) reward
LANE = 128


def _round_up(v, m):
    return (v + m - 1) // m * m


# --------------------------------------------------------------------------
# Fused Pallas kernel:
#   h      = relu(x @ W1 + b1)           (M, 128)    bf16 MXU, f32 acc + VPU
#   logits = h @ W2 + b2                 (M, C_pad)  bf16 MXU, f32 acc
#   out    = softmax over the batch (row) axis, rows >= n_valid masked
# --------------------------------------------------------------------------
def _reward_pred_kernel(n_valid_ref, x_ref, w1_ref, b1_ref, w2_ref, b2_ref, o_ref):
    # Layer 1: bf16 MXU inputs, f32 accumulation; bias+ReLU epilogue in f32.
    x_bf = x_ref[...].astype(jnp.bfloat16)
    h = jnp.dot(x_bf, w1_ref[...], preferred_element_type=jnp.float32)
    h = jnp.maximum(h + b1_ref[...], 0.0)

    # Layer 2.
    logits = jnp.dot(h.astype(jnp.bfloat16), w2_ref[...],
                     preferred_element_type=jnp.float32) + b2_ref[...]

    # F.softmax(logits.unsqueeze(0), dim=1): normalize over the batch rows,
    # independently per class column.  n_valid (SMEM scalar) must be >= 1.
    n = n_valid_ref[0]
    rows = lax.broadcasted_iota(jnp.int32, (logits.shape[0], 1), 0)  # (M, 1)
    valid = rows < n
    masked = jnp.where(valid, logits, -jnp.inf)
    m = jnp.max(masked, axis=0, keepdims=True)             # XLU sublane reduce
    e = jnp.where(valid, jnp.exp(masked - m), 0.0)         # EUP exp
    denom = jnp.sum(e, axis=0, keepdims=True)
    inv = pl.reciprocal(denom, approx=True)                # EUP, not VPU divide
    o_ref[...] = (e * inv).astype(o_ref.dtype)


def _fused_mlp_softmax(n_valid, x, w1, b1, w2, b2):
    m, k = x.shape
    h = w1.shape[1]
    c = w2.shape[1]
    cost = pl.CostEstimate(
        flops=2 * m * k * h + 2 * m * h * c,
        transcendentals=m * c,
        bytes_accessed=(x.size * x.dtype.itemsize
                        + w1.size * w1.dtype.itemsize
                        + b1.size * b1.dtype.itemsize
                        + w2.size * w2.dtype.itemsize
                        + b2.size * b2.dtype.itemsize
                        + m * c * 4 + 4),
    )
    return pl.pallas_call(
        _reward_pred_kernel,
        out_shape=jax.ShapeDtypeStruct((m, c), jnp.float32),
        in_specs=[
            pl.BlockSpec(memory_space=pltpu.MemorySpace.SMEM),   # n_valid (1,)
            pl.BlockSpec(memory_space=pltpu.MemorySpace.VMEM),   # x   (M, K)
            pl.BlockSpec(memory_space=pltpu.MemorySpace.VMEM),   # W1  (K, 128) bf16
            pl.BlockSpec(memory_space=pltpu.MemorySpace.VMEM),   # b1  (1, 128) f32
            pl.BlockSpec(memory_space=pltpu.MemorySpace.VMEM),   # W2  (128, 128) bf16
            pl.BlockSpec(memory_space=pltpu.MemorySpace.VMEM),   # b2  (1, 128) f32
        ],
        out_specs=pl.BlockSpec(memory_space=pltpu.MemorySpace.VMEM),
        cost_estimate=cost,
    )(n_valid, x, w1, b1, w2, b2)


# --------------------------------------------------------------------------
# One-time weight layout (PyTorch (out,in) -> "x @ W" orientation), class dim
# padded to 128 lanes, weights stored bf16, biases f32.
# --------------------------------------------------------------------------
def prepare_params(params, in_features):
    c_pad = _round_up(NUM_CLASSES, LANE)
    w1 = jnp.asarray(params["w1"], jnp.float32)          # (128, in_features)
    b1 = jnp.asarray(params["b1"], jnp.float32)          # (128,)
    w2 = jnp.asarray(params["w2"], jnp.float32)          # (3, 128)
    b2 = jnp.asarray(params["b2"], jnp.float32)          # (3,)

    w1_p = w1.T.astype(jnp.bfloat16)                                     # (K, 128)
    b1_p = b1.reshape(1, HIDDEN_FC)                                      # (1, 128)
    w2_p = jnp.zeros((HIDDEN_FC, c_pad), jnp.bfloat16).at[
        :, :NUM_CLASSES].set(w2.T.astype(jnp.bfloat16))                  # (128, 128)
    b2_p = jnp.zeros((1, c_pad), jnp.float32).at[0, :NUM_CLASSES].set(b2)
    assert w1_p.shape[0] == in_features
    return {"w1": w1_p, "b1": b1_p, "w2": w2_p, "b2": b2_p}


# --------------------------------------------------------------------------
# Forward pass (matches RewardPrediction.forward)
# --------------------------------------------------------------------------
def reward_prediction_forward(prepared, x):
    """x: (B, hidden_size*stack_num) -> (1, B, 3)."""
    b, f_in = x.shape
    assert f_in == prepared["w1"].shape[0]
    n_valid = jnp.full((1,), b, jnp.int32)       # runtime scalar, lives in SMEM
    out_p = _fused_mlp_softmax(
        n_valid, x.astype(jnp.float32),
        prepared["w1"], prepared["b1"], prepared["w2"], prepared["b2"])
    # Drop the lane padding of the class dim; unsqueeze(0) like the module.
    return out_p[:, :NUM_CLASSES][None, :, :]


# --------------------------------------------------------------------------
# Pure-JAX f32 reference (literal transcription of the PyTorch forward)
# --------------------------------------------------------------------------
def reward_prediction_reference(params, x):
    h = jnp.maximum(x @ params["w1"].T + params["b1"], 0.0)
    logits = h @ params["w2"].T + params["b2"]
    return jax.nn.softmax(logits[None, :, :], axis=1)   # softmax over dim=1


if __name__ == "__main__":
    # Shapes consistent with the module: hidden_size=32, stack_num=3
    # -> in_features = 96, batch = 2.
    batch, hidden_size, stack_num = 2, 32, 3
    in_features = hidden_size * stack_num

    key = jax.random.PRNGKey(0)
    kx, k1, k2, k3, k4 = jax.random.split(key, 5)
    x = jax.random.normal(kx, (batch, in_features), jnp.float32)
    params = {
        "w1": 0.1 * jax.random.normal(k1, (HIDDEN_FC, in_features), jnp.float32),
        "b1": 0.1 * jax.random.normal(k2, (HIDDEN_FC,), jnp.float32),
        "w2": 0.1 * jax.random.normal(k3, (NUM_CLASSES, HIDDEN_FC), jnp.float32),
        "b2": 0.1 * jax.random.normal(k4, (NUM_CLASSES,), jnp.float32),
    }

    prepared = prepare_params(params, in_features)
    fwd = jax.jit(reward_prediction_forward)
    out = jax.block_until_ready(fwd(prepared, x))

    ref = reward_prediction_reference(params, x)
    assert out.shape == (1, batch, NUM_CLASSES), out.shape
    # bf16 MXU inputs + approx reciprocal -> loosened tolerance vs f32 reference.
    assert jnp.allclose(out, ref, atol=2e-2, rtol=2e-2), "mismatch vs reference"
    # dim=1 softmax => each class column sums to ~1 over the batch axis
    assert jnp.allclose(out.sum(axis=1), 1.0, atol=5e-3)

    print("KERNEL_OK")
</pallas_src>

<mosaic_0001>
module attributes {stable_mosaic.version = 11 : i64} {
  func.func @_reward_pred_kernel(%arg0: memref<1xi32, #tpu.memory_space<smem>>, %arg1: memref<2x96xf32, #tpu.memory_space<vmem>>, %arg2: memref<96x128xbf16, #tpu.memory_space<vmem>>, %arg3: memref<1x128xf32, #tpu.memory_space<vmem>>, %arg4: memref<128x128xbf16, #tpu.memory_space<vmem>>, %arg5: memref<1x128xf32, #tpu.memory_space<vmem>>, %arg6: memref<2x128xf32, #tpu.memory_space<vmem>>) attributes {dimension_semantics = [], scalar_prefetch = 0 : i64, scratch_operands = 0 : i64, tpu.core_type = #tpu.core_type<tc>} {
    %c0 = arith.constant 0 : index
    %c0_0 = arith.constant 0 : index
    %0 = vector.load %arg1[%c0, %c0_0] : memref<2x96xf32, #tpu.memory_space<vmem>>, vector<2x96xf32>
    %1 = arith.truncf %0 : vector<2x96xf32> to vector<2x96xbf16>
    %c0_1 = arith.constant 0 : index
    %c0_2 = arith.constant 0 : index
    %2 = vector.load %arg2[%c0_1, %c0_2] : memref<96x128xbf16, #tpu.memory_space<vmem>>, vector<96x128xbf16>
    %cst = arith.constant dense<0.000000e+00> : vector<2x128xf32>
    %3 = tpu.matmul %1, %2, %cst {dimension_numbers = #tpu.dot_dimension_numbers<[1], [0], [0], [1], [0, 0, 1, 1], [], []>} : vector<2x96xbf16>, vector<96x128xbf16>, vector<2x128xf32> -> vector<2x128xf32>
    %c0_3 = arith.constant 0 : index
    %c0_4 = arith.constant 0 : index
    %4 = vector.load %arg3[%c0_3, %c0_4] : memref<1x128xf32, #tpu.memory_space<vmem>>, vector<1x128xf32>
    %5 = vector.broadcast %4 : vector<1x128xf32> to vector<2x128xf32>
    %6 = arith.addf %3, %5 : vector<2x128xf32>
    %cst_5 = arith.constant 0.000000e+00 : f32
    %7 = vector.broadcast %cst_5 : f32 to vector<2x128xf32>
    %8 = arith.maximumf %6, %7 : vector<2x128xf32>
    %9 = arith.truncf %8 : vector<2x128xf32> to vector<2x128xbf16>
    %c0_6 = arith.constant 0 : index
    %c0_7 = arith.constant 0 : index
    %10 = vector.load %arg4[%c0_6, %c0_7] : memref<128x128xbf16, #tpu.memory_space<vmem>>, vector<128x128xbf16>
    %cst_8 = arith.constant dense<0.000000e+00> : vector<2x128xf32>
    %11 = tpu.matmul %9, %10, %cst_8 {dimension_numbers = #tpu.dot_dimension_numbers<[1], [0], [0], [1], [0, 0, 1, 1], [], []>} : vector<2x128xbf16>, vector<128x128xbf16>, vector<2x128xf32> -> vector<2x128xf32>
    %c0_9 = arith.constant 0 : index
    %c0_10 = arith.constant 0 : index
    %12 = vector.load %arg5[%c0_9, %c0_10] : memref<1x128xf32, #tpu.memory_space<vmem>>, vector<1x128xf32>
    %13 = vector.broadcast %12 : vector<1x128xf32> to vector<2x128xf32>
    %14 = arith.addf %11, %13 : vector<2x128xf32>
    %c0_11 = arith.constant 0 : index
    %15 = memref.load %arg0[%c0_11] : memref<1xi32, #tpu.memory_space<smem>>
    %16 = tpu.iota {dimensions = array<i32: 0>} : vector<2x1xi32>
    %17 = vector.broadcast %15 : i32 to vector<2x1xi32>
    %18 = arith.cmpi slt, %16, %17 : vector<2x1xi32>
    %cst_12 = arith.constant 0xFF800000 : f32
    %19 = vector.shape_cast %18 : vector<2x1xi1> to vector<2x1xi1>
    %20 = vector.broadcast %19 : vector<2x1xi1> to vector<2x128xi1>
    %21 = vector.broadcast %cst_12 : f32 to vector<2x128xf32>
    %22 = arith.select %20, %14, %21 : vector<2x128xi1>, vector<2x128xf32>
    %cst_13 = arith.constant dense<0xFF800000> : vector<128xf32>
    %23 = vector.multi_reduction <maximumf>, %22, %cst_13 [0] : vector<2x128xf32> to vector<128xf32>
    %24 = vector.shape_cast %23 : vector<128xf32> to vector<1x128xf32>
    %25 = vector.broadcast %24 : vector<1x128xf32> to vector<2x128xf32>
    %26 = arith.subf %22, %25 : vector<2x128xf32>
    %27 = math.exp %26 : vector<2x128xf32>
    %cst_14 = arith.constant 0.000000e+00 : f32
    %28 = vector.shape_cast %18 : vector<2x1xi1> to vector<2x1xi1>
    %29 = vector.broadcast %28 : vector<2x1xi1> to vector<2x128xi1>
    %30 = vector.broadcast %cst_14 : f32 to vector<2x128xf32>
    %31 = arith.select %29, %27, %30 : vector<2x128xi1>, vector<2x128xf32>
    %cst_15 = arith.constant dense<0.000000e+00> : vector<128xf32>
    %32 = vector.multi_reduction <add>, %31, %cst_15 [0] : vector<2x128xf32> to vector<128xf32>
    %33 = vector.shape_cast %32 : vector<128xf32> to vector<1x128xf32>
    %34 = tpu.reciprocal %33 {approx = true} : vector<1x128xf32> -> vector<1x128xf32>
    %35 = vector.broadcast %34 : vector<1x128xf32> to vector<2x128xf32>
    %36 = arith.mulf %31, %35 : vector<2x128xf32>
    %c0_16 = arith.constant 0 : index
    %c0_17 = arith.constant 0 : index
    %37 = vector.load %arg6[%c0_16, %c0_17] : memref<2x128xf32, #tpu.memory_space<vmem>>, vector<2x128xf32>
    tpu.vector_store %arg6[%c0_16, %c0_17], %36 {strides = array<i32>} : memref<2x128xf32, #tpu.memory_space<vmem>>, vector<2x128xf32>,
    return
  }
}

</mosaic_0001>

<llo_original>
// kernel: reward_prediction_forward.1
$region0: #{reward_prediction_forward.1}
  #allocation0 [shape = 'u32[]', space=smem, size = 0x4, offset = 0x4, fixed_abs, tag = 'smem constant byte address 0x4 - core index']
  #allocation1 [shape = 'u32[144,128]{1,0:T(1,128)}', space=vmem, size = 0x12000, scoped, tag = 'internal scratch']
  #allocation2 [shape = 's32[1]{0:T(128)S(6)}', space=smem, size = 0x200, scoped, tag = 'scoped memory for reward_prediction_forward.1']
  %s0 = inlined_call_operand.<no memory space> [shape: s32[1], index: 0, kind: input, shape index: {}]
  %s1 = inlined_call_operand.vmem [shape: f32[2,96], index: 1, kind: input, shape index: {}]
  %s2 = inlined_call_operand.hbm [shape: bf16[96,128], index: 2, kind: input, shape index: {}]
  %s3 = inlined_call_operand.hbm [shape: f32[1,128], index: 3, kind: input, shape index: {}]
  %s4 = inlined_call_operand.hbm [shape: bf16[128,128], index: 4, kind: input, shape index: {}]
  %s5 = inlined_call_operand.vmem [shape: f32[1,128], index: 5, kind: input, shape index: {}]
  %s6 = inlined_call_operand.vmem [shape: f32[2,128], index: 6, kind: output, shape index: {}]
  %s7 = sld [smem:[#allocation0]]
  $region46: #{reward_prediction_forward.1} parent=0
    _
  %s9 = ssub.s32 1, %s7
  %s10 = scalar_select 0, %s9, %s7
  %11 = sst [smem:[#allocation2]] %s0
  $region1: #{reward_prediction_forward.1} parent=0
    #allocation3 [shape = 'u8[24576]{0}', space=vmem, size = 0x6000, scoped, tag = 'input window, operand 2, single buffered']
    #allocation4 [shape = 's32[1]{0}', space=sflag, size = 0x4, scoped, tag = 'scoped memory for reward_prediction_forward.1']
    #allocation5 [shape = 'u8[512]{0}', space=vmem, size = 0x400, scoped, tag = 'input window, operand 3, single buffered']
    #allocation6 [shape = 's32[1]{0}', space=sflag, size = 0x4, scoped, tag = 'scoped memory for reward_prediction_forward.1']
    #allocation7 [shape = 'u8[32768]{0}', space=vmem, size = 0x8000, scoped, tag = 'input window, operand 4, single buffered']
    %12 = vsyncpa [#allocation4], 0
    %13 = vsyncpa [#allocation6], 0
    // Predicated region
    $region2: #{reward_prediction_forward.1} parent=1 // pred_check
      _
    $region3: #{reward_prediction_forward.1} parent=1 // pred_check_branch
      %15 = sbr.rel (0) target = $region5
    $region4: #{reward_prediction_forward.1} parent=1 // pred_region
      _
    $region5: #{reward_prediction_forward.1} parent=1 // pred_fallthru
      _
    // Predicated region
    $region6: #{reward_prediction_forward.1} parent=1 // pred_check
      _
    $region7: #{reward_prediction_forward.1} parent=1 // pred_check_branch
      %17 = sbr.rel (0) target = $region9
    $region8: #{reward_prediction_forward.1} parent=1 // pred_region
      _
    $region9: #{reward_prediction_forward.1} parent=1 // pred_fallthru
      _
    // Predicated region
    $region10: #{reward_prediction_forward.1} parent=1 // pred_check
      _
    $region11: #{reward_prediction_forward.1} parent=1 // pred_check_branch
      %19 = sbr.rel (0) target = $region13
    $region12: #{reward_prediction_forward.1} parent=1 // pred_region
      %s21 = ssub.s32 768, 768
      %22 = vsyncadd [#allocation4], %s21
      %s23 = sshll.u32 [#allocation3], 4
      %s24 = int_to_ptr.vmem [resolvable:$true] %s23
      %29 = dma.hbm_to_vmem [thread:$0]  %s2, 768, %s24, [#allocation4], 64, 64, 4
    $region13: #{reward_prediction_forward.1} parent=1 // pred_fallthru
      _
    // Predicated region
    $region14: #{reward_prediction_forward.1} parent=1 // pred_check
      _
    $region15: #{reward_prediction_forward.1} parent=1 // pred_check_branch
      %31 = sbr.rel (0) target = $region17
    $region16: #{reward_prediction_forward.1} parent=1 // pred_region
      %s33 = ssub.s32 16, 16
      %34 = vsyncadd [#allocation6], %s33
      %s36 = sshll.u32 [#allocation5], 4
      %s37 = int_to_ptr.vmem [resolvable:$true] %s36
      %39 = dma.hbm_to_vmem [thread:$0]  %s3, 16, %s37, [#allocation6]
    $region17: #{reward_prediction_forward.1} parent=1 // pred_fallthru
      _
    // Predicated region
    $region18: #{reward_prediction_forward.1} parent=1 // pred_check
      _
    $region19: #{reward_prediction_forward.1} parent=1 // pred_check_branch
      %41 = sbr.rel (0) target = $region21
    $region20: #{reward_prediction_forward.1} parent=1 // pred_region
      %s43 = ssub.s32 1024, 1024
      %44 = vsyncadd [#allocation6], %s43
      %s45 = sshll.u32 [#allocation7], 4
      %s46 = int_to_ptr.vmem [resolvable:$true] %s45
      %51 = dma.hbm_to_vmem [thread:$0]  %s4, 1024, %s46, [#allocation6], 64, 64, 4
    $region21: #{reward_prediction_forward.1} parent=1 // pred_fallthru
      _
    // Predicated region
    $region22: #{reward_prediction_forward.1} parent=1 // pred_check
      _
    $region23: #{reward_prediction_forward.1} parent=1 // pred_check_branch
      %53 = sbr.rel (0) target = $region25
    $region24: #{reward_prediction_forward.1} parent=1 // pred_region
      _
    $region25: #{reward_prediction_forward.1} parent=1 // pred_fallthru
      _
    // Predicated region
    $region26: #{reward_prediction_forward.1} parent=1 // pred_check
      _
    $region27: #{reward_prediction_forward.1} parent=1 // pred_check_branch
      %55 = sbr.rel (0) target = $region29
    $region28: #{reward_prediction_forward.1} parent=1 // pred_region
      %56 = dma.done [#allocation4], 768
    $region29: #{reward_prediction_forward.1} parent=1 // pred_fallthru
      _
    // Predicated region
    $region30: #{reward_prediction_forward.1} parent=1 // pred_check
      _
    $region31: #{reward_prediction_forward.1} parent=1 // pred_check_branch
      %58 = sbr.rel (0) target = $region33
    $region32: #{reward_prediction_forward.1} parent=1 // pred_region
      %59 = dma.done [#allocation6], 16
    $region33: #{reward_prediction_forward.1} parent=1 // pred_fallthru
      _
    // Predicated region
    $region34: #{reward_prediction_forward.1} parent=1 // pred_check
      _
    $region35: #{reward_prediction_forward.1} parent=1 // pred_check_branch
      %61 = sbr.rel (0) target = $region37
    $region36: #{reward_prediction_forward.1} parent=1 // pred_region
      %62 = dma.done [#allocation6], 1024
    $region37: #{reward_prediction_forward.1} parent=1 // pred_fallthru
      _
    %v64 = vld [vmem:[%s1] sm:$0x3]
    %v65 = vpack.c.bf16 %v64, %v64
    %v66 = vld [vmem:[#allocation3] sm:$0xf]
    %v67 = vld [vmem:[#allocation3 + $0x4] sm:$0xf]
    %v68 = vld [vmem:[#allocation3 + $0x8] sm:$0xf]
    %v69 = vld [vmem:[#allocation3 + $0xc] sm:$0xf]
    %v70 = vld [vmem:[#allocation3 + $0x10] sm:$0xf]
    %v71 = vld [vmem:[#allocation3 + $0x14] sm:$0xf]
    %v72 = vld [vmem:[#allocation3 + $0x18] sm:$0xf]
    %v73 = vld [vmem:[#allocation3 + $0x1c] sm:$0xf]
    %v74 = vld [vmem:[#allocation3 + $0x20] sm:$0xf]
    %v75 = vld [vmem:[#allocation3 + $0x24] sm:$0xf]
    %v76 = vld [vmem:[#allocation3 + $0x28] sm:$0xf]
    %v77 = vld [vmem:[#allocation3 + $0x2c] sm:$0xf]
    %v78 = vld [vmem:[#allocation5] sm:$0x1]
    %v80 = vlaneseq
    %v81 = vshrl.u32 %v80, 7
    %v82 = vsub.s32 0, %v81
    %v83 = vrot.slane %v78, %v82
    %v97 = vunpack.c.l.b16 %v66
    %v98 = vunpack.c.l.b16 %v67
    %v99 = vunpack.c.l.b16 %v68
    %v100 = vunpack.c.l.b16 %v69
    %v101 = vunpack.c.l.b16 %v70
    %v102 = vunpack.c.l.b16 %v71
    %v103 = vunpack.c.l.b16 %v72
    %v104 = vunpack.c.l.b16 %v73
    %v105 = vunpack.c.l.b16 %v74
    %v106 = vunpack.c.l.b16 %v75
    %v107 = vunpack.c.l.b16 %v76
    %v108 = vunpack.c.l.b16 %v77
    %v109 = vpack.c.b16 %v98, %v97
    %v110 = vpack.c.b16 %v100, %v99
    %v111 = vpack.c.b16 %v102, %v101
    %v112 = vpack.c.b16 %v104, %v103
    %v113 = vpack.c.b16 %v106, %v105
    %v114 = vpack.c.b16 %v108, %v107
    %vm121 = vcmask 785408
    %v123 = vsel %vm121, %v65, 0
    %125 = vmatprep.subr.bf16.mxu0 0
    %126 = vmatpush1.bf16.msra.mxu0 %v109
    %127 = vmatprep.subr.bf16.mxu0 0
    %128 = vmatpush1.bf16.msra.mxu0 %v110
    %129 = vmatprep.subr.bf16.mxu0 0
    %130 = vmatpush1.bf16.msra.mxu0 %v111
    %131 = vmatprep.subr.bf16.mxu0 0
    %132 = vmatpush1.bf16.msra.mxu0 %v112
    %133 = vmatprep.subr.bf16.mxu0 0
    %134 = vmatpush1.bf16.msra.mxu0 %v113
    %135 = vmatprep.subr.bf16.mxu0 0
    %136 = vmatpush1.bf16.msra.mxu0 %v114
    %137 = vmatprep.subr.bf16.mxu0 0
    %138 = vmatpush1.bf16.msra.mxu0 0
    %139 = vmatprep.subr.bf16.mxu0 0
    %140 = vmatpush1.bf16.msra.mxu0 0
    %141 = vmatprep.subr.bf16.mxu0 0
    %142 = vmatpush1.bf16.msra.mxu0 0
    %143 = vmatprep.subr.bf16.mxu0 0
    %144 = vmatpush1.bf16.msra.mxu0 0
    %145 = vmatprep.subr.bf16.mxu0 0
    %146 = vmatpush1.bf16.msra.mxu0 0
    %147 = vmatprep.subr.bf16.mxu0 0
    %148 = vmatpush1.bf16.msra.mxu0 0
    %149 = vmatprep.subr.bf16.mxu0 0
    %150 = vmatpush1.bf16.msra.mxu0 0
    %151 = vmatprep.subr.bf16.mxu0 0
    %152 = vmatpush1.bf16.msra.mxu0 0
    %153 = vmatprep.subr.bf16.mxu0 0
    %154 = vmatpush1.bf16.msra.mxu0 0
    %155 = vmatprep.subr.bf16.mxu0 0
    %156 = vmatpush1.bf16.msra.mxu0 0
    %157 = vmatprep.mubr.bf16.mxu0 0
    %158 = vmatmul.mubr.bf16.gmra.mrb[0].mxu0 %v123
    %v159 = vpop.f32.mrb[0].mxu0
    %v160 = vadd.f32 %v83, %v159
    %v161 = vpop.f32.mrb[0].mxu0
    %v162 = vpop.f32.mrb[0].mxu0
    %v163 = vpop.f32.mrb[0].mxu0
    %164 = vdwg.mxu0
    %v165 = vmax.f32 %v160, 0.0
    %v166 = vpack.c.bf16 %v165, %v165
    %v167 = vld [vmem:[#allocation7] sm:$0xf]
    %v168 = vld [vmem:[#allocation7 + $0x4] sm:$0xf]
    %v169 = vld [vmem:[#allocation7 + $0x8] sm:$0xf]
    %v170 = vld [vmem:[#allocation7 + $0xc] sm:$0xf]
    %v171 = vld [vmem:[#allocation7 + $0x10] sm:$0xf]
    %v172 = vld [vmem:[#allocation7 + $0x14] sm:$0xf]
    %v173 = vld [vmem:[#allocation7 + $0x18] sm:$0xf]
    %v174 = vld [vmem:[#allocation7 + $0x1c] sm:$0xf]
    %v175 = vld [vmem:[#allocation7 + $0x20] sm:$0xf]
    %v176 = vld [vmem:[#allocation7 + $0x24] sm:$0xf]
    %v177 = vld [vmem:[#allocation7 + $0x28] sm:$0xf]
    %v178 = vld [vmem:[#allocation7 + $0x2c] sm:$0xf]
    %v179 = vld [vmem:[#allocation7 + $0x30] sm:$0xf]
    %v180 = vld [vmem:[#allocation7 + $0x34] sm:$0xf]
    %v181 = vld [vmem:[#allocation7 + $0x38] sm:$0xf]
    %v182 = vld [vmem:[#allocation7 + $0x3c] sm:$0xf]
    %v183 = vld [vmem:[%s5] sm:$0x1]
    %v185 = vlaneseq
    %v186 = vshrl.u32 %v185, 7
    %v187 = vsub.s32 0, %v186
    %v188 = vrot.slane %v183, %v187
    %v206 = vunpack.c.l.b16 %v167
    %v207 = vunpack.c.l.b16 %v168
    %v208 = vunpack.c.l.b16 %v169
    %v209 = vunpack.c.l.b16 %v170
    %v210 = vunpack.c.l.b16 %v171
    %v211 = vunpack.c.l.b16 %v172
    %v212 = vunpack.c.l.b16 %v173
    %v213 = vunpack.c.l.b16 %v174
    %v214 = vunpack.c.l.b16 %v175
    %v215 = vunpack.c.l.b16 %v176
    %v216 = vunpack.c.l.b16 %v177
    %v217 = vunpack.c.l.b16 %v178
    %v218 = vunpack.c.l.b16 %v179
    %v219 = vunpack.c.l.b16 %v180
    %v220 = vunpack.c.l.b16 %v181
    %v221 = vunpack.c.l.b16 %v182
    %v222 = vpack.c.b16 %v207, %v206
    %v223 = vpack.c.b16 %v209, %v208
    %v224 = vpack.c.b16 %v211, %v210
    %v225 = vpack.c.b16 %v213, %v212
    %v226 = vpack.c.b16 %v215, %v214
    %v227 = vpack.c.b16 %v217, %v216
    %v228 = vpack.c.b16 %v219, %v218
    %v229 = vpack.c.b16 %v221, %v220
    %238 = vmatprep.subr.bf16.mxu0 0
    %239 = vmatpush1.bf16.msra.mxu0 %v222
    %240 = vmatprep.subr.bf16.mxu0 0
    %241 = vmatpush1.bf16.msra.mxu0 %v223
    %242 = vmatprep.subr.bf16.mxu0 0
    %243 = vmatpush1.bf16.msra.mxu0 %v224
    %244 = vmatprep.subr.bf16.mxu0 0
    %245 = vmatpush1.bf16.msra.mxu0 %v225
    %246 = vmatprep.subr.bf16.mxu0 0
    %247 = vmatpush1.bf16.msra.mxu0 %v226
    %248 = vmatprep.subr.bf16.mxu0 0
    %249 = vmatpush1.bf16.msra.mxu0 %v227
    %250 = vmatprep.subr.bf16.mxu0 0
    %251 = vmatpush1.bf16.msra.mxu0 %v228
    %252 = vmatprep.subr.bf16.mxu0 0
    %253 = vmatpush1.bf16.msra.mxu0 %v229
    %254 = vmatprep.subr.bf16.mxu0 0
    %255 = vmatpush1.bf16.msra.mxu0 0
    %256 = vmatprep.subr.bf16.mxu0 0
    %257 = vmatpush1.bf16.msra.mxu0 0
    %258 = vmatprep.subr.bf16.mxu0 0
    %259 = vmatpush1.bf16.msra.mxu0 0
    %260 = vmatprep.subr.bf16.mxu0 0
    %261 = vmatpush1.bf16.msra.mxu0 0
    %262 = vmatprep.subr.bf16.mxu0 0
    %263 = vmatpush1.bf16.msra.mxu0 0
    %264 = vmatprep.subr.bf16.mxu0 0
    %265 = vmatpush1.bf16.msra.mxu0 0
    %266 = vmatprep.subr.bf16.mxu0 0
    %267 = vmatpush1.bf16.msra.mxu0 0
    %268 = vmatprep.subr.bf16.mxu0 0
    %269 = vmatpush1.bf16.msra.mxu0 0
    %270 = vmatprep.mubr.bf16.mxu0 0
    %271 = vmatmul.mubr.bf16.gmra.mrb[0].mxu0 %v166
    %v272 = vpop.f32.mrb[0].mxu0
    %v273 = vadd.f32 %v188, %v272
    %v274 = vpop.f32.mrb[0].mxu0
    %v275 = vpop.f32.mrb[0].mxu0
    %v276 = vpop.f32.mrb[0].mxu0
    %277 = vdwg.mxu0
    %s278 = sld [smem:[#allocation2]]
    %v279 = vlaneseq
    %v280 = vshrl.u32 %v279, 7
    %v281 = vstv %s278
    %vm282 = vcmp.lt.s32.totalorder %v280, %v281
    %v283 = vsel %vm282, 1, 0
    %vm284 = vcmp.eq.s32.totalorder %v283, 1
    %v285 = vsel %vm284, %v273, -inf
    %vm286 = vcmask 1041408
    %v287 = vsel %vm286, %v285, -inf
    %v288 = vrot.slane %v287, 4
    %v289 = vmax.f32 %v287, %v288
    %v290 = vrot.slane %v289, 2
    %v291 = vmax.f32 %v289, %v290
    %v292 = vrot.slane %v291, 1
    %v293 = vmax.f32 %v291, %v292
    %v294 = vsub.f32 %v285, %v293
    %v295 = vmul.f32 %v294, 1.442695
    %v296 = vpow.pop %v295
    %v297 = vsel %vm284, %v296, 0.0
    %v298 = vsel %vm286, %v297, 0.0
    %v299 = vrot.slane %v298, 4
    %v300 = vadd.f32 %v298, %v299
    %v301 = vrot.slane %v300, 2
    %v302 = vadd.f32 %v300, %v301
    %v303 = vrot.slane %v302, 1
    %v304 = vadd.f32 %v302, %v303
    %v305 = vrcp.pop %v304
    %v306 = vmul.f32 %v297, %v305
    %307 = vst [vmem:[%s6] sm:$0x3] %v306
    // Predicated region
    $region38: #{reward_prediction_forward.1} parent=1 // pred_check
      _
    $region39: #{reward_prediction_forward.1} parent=1 // pred_check_branch
      %309 = sbr.rel (0) target = $region41
    $region40: #{reward_prediction_forward.1} parent=1 // pred_region
      _
    $region41: #{reward_prediction_forward.1} parent=1 // pred_fallthru
      _
    // Predicated region
    $region42: #{reward_prediction_forward.1} parent=1 // pred_check
      _
    $region43: #{reward_prediction_forward.1} parent=1 // pred_check_branch
      %311 = sbr.rel (0) target = $region45
    $region44: #{reward_prediction_forward.1} parent=1 // pred_region
      _
    $region45: #{reward_prediction_forward.1} parent=1 // pred_fallthru
      _
    %312 = vsyncpa [#allocation4], 1
    %313 = vsyncpa [#allocation6], 1

</llo_original>
